<compile_context>
chip_gen: v6e
topology: v6e:2x2x1
jax: 0.10.0
libtpu: 0.0.40
codegen_flags: <defaults>
</compile_context>

<pallas_src>
import functools

import jax
import jax.numpy as jnp
from jax import lax
from jax.experimental import pallas as pl
from jax.experimental.pallas import tpu as pltpu


def _round_up(x: int, m: int) -> int:
    return (x + m - 1) // m * m


def _largest_aligned_divisor(n: int, align: int, cap: int) -> int:
    """Largest multiple of `align` that divides n (n % align == 0) and is <= cap."""
    best = align
    t = align
    top = min(n, cap)
    while t <= top:
        if n % t == 0:
            best = t
        t += align
    return best


def _vmem_capacity_bytes() -> int:
    """Physical per-core VMEM; conservative (v7x) fallback if the query fails."""
    try:
        info = pltpu.get_tpu_info()
        cap = int(getattr(info, "vmem_capacity_bytes", 0))
        if cap > 0:
            return cap
    except Exception:
        pass
    return 64 * 1024 * 1024


# ----------------------------------------------------------------------------
# Kernels
# ----------------------------------------------------------------------------
def _dist_kernel_fused(qsq_ref, ssq_ref, q_ref, s_ref, o_ref, *, squared):
    """One (TQ, TS) output tile, full contraction dim in one MXU dot.

    qsq_ref : (TQ, 1)  f32 precomputed ||q||^2
    ssq_ref : (1, TS)  f32 precomputed ||s||^2 (lane-major, no in-kernel transpose)
    q_ref   : (TQ, D)  queries tile (input dtype; MXU contracts dim 1 directly)
    s_ref   : (TS, D)  supports tile
    o_ref   : (TQ, TS) output tile (TS multiple of 128 -> unmasked stores)
    """
    cross = lax.dot_general(
        q_ref[...], s_ref[...],
        dimension_numbers=(((1,), (1,)), ((), ())),
        preferred_element_type=jnp.float32,
    )
    d2 = jnp.maximum(qsq_ref[...] + ssq_ref[...] - 2.0 * cross, 0.0)
    out = -d2 if squared else -jnp.sqrt(d2)
    o_ref[...] = out.astype(o_ref.dtype)


def _dist_kernel_dtiled(qsq_ref, ssq_ref, q_ref, s_ref, o_ref, acc_ref, *, squared):
    """Same tile, but the contraction dim D is tiled along grid axis 2 with an
    f32 VMEM accumulator (keeps full MXU-shaped (TQ, TS) output tiles)."""
    k = pl.program_id(2)

    @pl.when(k == 0)
    def _():
        acc_ref[...] = jnp.zeros_like(acc_ref)

    acc_ref[...] += lax.dot_general(
        q_ref[...], s_ref[...],
        dimension_numbers=(((1,), (1,)), ((), ())),
        preferred_element_type=jnp.float32,
    )

    @pl.when(k == pl.num_programs(2) - 1)
    def _():
        d2 = jnp.maximum(qsq_ref[...] + ssq_ref[...] - 2.0 * acc_ref[...], 0.0)
        out = -d2 if squared else -jnp.sqrt(d2)
        o_ref[...] = out.astype(o_ref.dtype)


# ----------------------------------------------------------------------------
# Wrapper (mirrors EuclideanLoss.forward)
# ----------------------------------------------------------------------------
def euclidean_loss(supports, queries, *, way, shot, query, squared=False):
    """Returns (dist, label):

    dist[i, j] = -||supports[j] - queries[i]||_2   (shape (Q, S), float32)
                 (or -||.||^2 if squared=True)
    label[i]   = i // query                        (shape (Q,), int32)
    """
    del way, shot  # shapes already encode way*shot / way*query
    S, D = supports.shape
    Q, D2 = queries.shape
    assert D == D2

    in_dtype = supports.dtype
    isize = jnp.dtype(in_dtype).itemsize
    # bf16 packs 2 rows/sublane, int8/fp8 pack 4: align tile rows to the
    # native packed layout so DMA'd tiles need no relayout.
    row_align = {4: 8, 2: 16, 1: 32}.get(isize, 8)

    # ---- per-generation VMEM budget ----------------------------------------
    vmem_cap = _vmem_capacity_bytes()
    vmem_limit = min(vmem_cap // 2, 64 * 1024 * 1024)   # scoped limit we request
    tile_budget = vmem_limit - 8 * 1024 * 1024          # headroom for internal scratch
    big_vmem = tile_budget >= 40 * 1024 * 1024          # v5e/v6e (128 MiB physical)

    ts_cap = 1024 if big_vmem else 512                  # output lane dim cap
    tq_cap = 512 if big_vmem else 256                   # output sublane dim cap
    td_cap = 2048 if big_vmem else 1024                 # contraction chunk cap

    # ---- padded shapes & tiles (minimal padding; tiles divide padded dims) --
    D_pad = _round_up(D, 128)
    S_pad = _round_up(S, 128)
    Q_pad = _round_up(Q, row_align)

    TS = S_pad if S_pad <= ts_cap else ts_cap
    if S_pad % TS != 0:
        S_pad = _round_up(S_pad, TS)
    TQ = Q_pad if Q_pad <= tq_cap else tq_cap
    if Q_pad % TQ != 0:
        Q_pad = _round_up(Q_pad, TQ)

    def _step_bytes(tq, ts, td):
        # double-buffered q/s/out tiles + tiny norm vectors (f32 output/norms)
        return 2 * (tq * td * isize + ts * td * isize + tq * ts * 4
                    + tq * 4 + ts * 4)

    if _step_bytes(TQ, TS, D_pad) <= tile_budget:
        d_tiled = False
        TD = D_pad
    else:
        # Never shrink the MXU output dims (TQ/TS); tile D instead.
        d_tiled = True
        TD = _largest_aligned_divisor(D_pad, 128, td_cap)
        while TD > 128 and _step_bytes(TQ, TS, TD) + TQ * TS * 4 > tile_budget:
            TD = _largest_aligned_divisor(D_pad, 128, TD - 128)

    nq, ns = Q_pad // TQ, S_pad // TS
    if nq * ns == 1:
        # Typical protonet shapes give a (1, 1) grid; split so v7x's second
        # TensorCore gets work (both axes are "parallel").
        if TQ % (2 * row_align) == 0:
            TQ //= 2
        elif TS % 256 == 0:
            TS //= 2
        nq, ns = Q_pad // TQ, S_pad // TS

    # ---- zero-pad only when needed (zero rows/cols don't perturb distances) -
    if (S_pad, D_pad) != (S, D):
        sp = jnp.zeros((S_pad, D_pad), in_dtype).at[:S, :D].set(supports)
    else:
        sp = supports
    if (Q_pad, D_pad) != (Q, D):
        qp = jnp.zeros((Q_pad, D_pad), queries.dtype).at[:Q, :D].set(queries)
    else:
        qp = queries

    # Norms computed once per call in f32, oriented for in-kernel broadcast
    # (no per-step casts / cross-lane reduces inside the kernel).
    spf = sp.astype(jnp.float32)
    qpf = qp.astype(jnp.float32)
    s_sq = jnp.sum(spf * spf, axis=-1)[None, :]   # (1, S_pad)
    q_sq = jnp.sum(qpf * qpf, axis=-1)[:, None]   # (Q_pad, 1)

    cost = pl.CostEstimate(
        flops=2 * Q_pad * S_pad * D_pad + 5 * Q_pad * S_pad,
        transcendentals=0 if squared else Q_pad * S_pad,
        bytes_accessed=(isize * (Q_pad * D_pad + S_pad * D_pad)
                        + 4 * (Q_pad * S_pad + Q_pad + S_pad)),
    )

    if not d_tiled:
        kernel = functools.partial(_dist_kernel_fused, squared=squared)
        grid = (nq, ns)
        in_specs = [
            pl.BlockSpec((TQ, 1), lambda i, j: (i, 0)),        # ||q||^2
            pl.BlockSpec((1, TS), lambda i, j: (0, j)),        # ||s||^2
            pl.BlockSpec((TQ, D_pad), lambda i, j: (i, 0)),    # queries
            pl.BlockSpec((TS, D_pad), lambda i, j: (j, 0)),    # supports
        ]
        out_spec = pl.BlockSpec((TQ, TS), lambda i, j: (i, j))
        scratch = []
        dim_sem = ("parallel", "parallel")
    else:
        kernel = functools.partial(_dist_kernel_dtiled, squared=squared)
        grid = (nq, ns, D_pad // TD)
        in_specs = [
            pl.BlockSpec((TQ, 1), lambda i, j, k: (i, 0)),     # ||q||^2
            pl.BlockSpec((1, TS), lambda i, j, k: (0, j)),     # ||s||^2
            pl.BlockSpec((TQ, TD), lambda i, j, k: (i, k)),    # queries chunk
            pl.BlockSpec((TS, TD), lambda i, j, k: (j, k)),    # supports chunk
        ]
        out_spec = pl.BlockSpec((TQ, TS), lambda i, j, k: (i, j))
        scratch = [pltpu.VMEM((TQ, TS), jnp.float32)]
        dim_sem = ("parallel", "parallel", "arbitrary")

    dist_pad = pl.pallas_call(
        kernel,
        out_shape=jax.ShapeDtypeStruct((Q_pad, S_pad), jnp.float32),
        grid_spec=pltpu.PrefetchScalarGridSpec(
            num_scalar_prefetch=0,
            grid=grid,
            in_specs=in_specs,
            out_specs=out_spec,
            scratch_shapes=scratch,
        ),
        compiler_params=pltpu.CompilerParams(
            dimension_semantics=dim_sem,
            vmem_limit_bytes=int(vmem_limit),
        ),
        cost_estimate=cost,
    )(q_sq, s_sq, qp, sp)

    dist = dist_pad if (Q_pad, S_pad) == (Q, S) else dist_pad[:Q, :S]

    # Label construction is pure glue (no hot-path compute) -> plain JAX.
    # TODO(synk): torch returns int64 (LongTensor); JAX default int is int32.
    label = jnp.arange(Q, dtype=jnp.int32) // jnp.int32(query)
    return dist, label


if __name__ == "__main__":
    way, shot, query = 4, 1, 8
    D = 32

    key = jax.random.PRNGKey(0)
    ks, kq = jax.random.split(key)
    supports = jax.random.normal(ks, (way * shot, D), dtype=jnp.float32)
    queries = jax.random.normal(kq, (way * query, D), dtype=jnp.float32)

    dist, label = euclidean_loss(supports, queries, way=way, shot=shot, query=query)
    dist = jax.block_until_ready(dist)
    label = jax.block_until_ready(label)

    # Lightweight correctness check against a pure-JAX reference.
    ref = -jnp.sqrt(
        jnp.maximum(
            jnp.sum((supports[:, None, :] - queries[None, :, :]) ** 2, axis=-1), 0.0
        )
    ).T
    assert dist.shape == (way * query, way * shot)
    assert label.shape == (way * query,)
    assert jnp.allclose(dist, ref, atol=1e-4, rtol=1e-4)
    assert jnp.array_equal(label, jnp.arange(way * query) // query)

    print("KERNEL_OK")
</pallas_src>

<mosaic_0001>
module attributes {stable_mosaic.version = 11 : i64} {
  func.func @_dist_kernel_fused(%arg0: i32, %arg1: i32, %arg2: memref<16x1xf32, #tpu.memory_space<vmem>>, %arg3: memref<1x128xf32, #tpu.memory_space<vmem>>, %arg4: memref<16x128xf32, #tpu.memory_space<vmem>>, %arg5: memref<128x128xf32, #tpu.memory_space<vmem>>, %arg6: memref<16x128xf32, #tpu.memory_space<vmem>>) attributes {dimension_semantics = [#tpu.dimension_semantics<parallel>, #tpu.dimension_semantics<parallel>], iteration_bounds = array<i64: 2, 1>, scalar_prefetch = 0 : i64, scratch_operands = 0 : i64, tpu.core_type = #tpu.core_type<tc>, window_params = [{transform_indices = @transform_0, window_bounds = array<i64: 16, 1>}, {transform_indices = @transform_1, window_bounds = array<i64: 1, 128>}, {transform_indices = @transform_2, window_bounds = array<i64: 16, 128>}, {transform_indices = @transform_3, window_bounds = array<i64: 128, 128>}, {transform_indices = @transform_4, window_bounds = array<i64: 16, 128>}]} {
    %c0 = arith.constant 0 : index
    %c0_0 = arith.constant 0 : index
    %0 = vector.load %arg4[%c0, %c0_0] : memref<16x128xf32, #tpu.memory_space<vmem>>, vector<16x128xf32>
    %c0_1 = arith.constant 0 : index
    %c0_2 = arith.constant 0 : index
    %1 = vector.load %arg5[%c0_1, %c0_2] : memref<128x128xf32, #tpu.memory_space<vmem>>, vector<128x128xf32>
    %cst = arith.constant dense<0.000000e+00> : vector<16x128xf32>
    %2 = tpu.matmul %0, %1, %cst {dimension_numbers = #tpu.dot_dimension_numbers<[1], [1], [0], [0], [0, 0, 1, 0], [], []>} : vector<16x128xf32>, vector<128x128xf32>, vector<16x128xf32> -> vector<16x128xf32>
    %c0_3 = arith.constant 0 : index
    %c0_4 = arith.constant 0 : index
    %3 = vector.load %arg2[%c0_3, %c0_4] : memref<16x1xf32, #tpu.memory_space<vmem>>, vector<16x1xf32>
    %c0_5 = arith.constant 0 : index
    %c0_6 = arith.constant 0 : index
    %4 = vector.load %arg3[%c0_5, %c0_6] : memref<1x128xf32, #tpu.memory_space<vmem>>, vector<1x128xf32>
    %5 = vector.broadcast %3 : vector<16x1xf32> to vector<16x128xf32>
    %6 = vector.broadcast %4 : vector<1x128xf32> to vector<16x128xf32>
    %7 = arith.addf %5, %6 : vector<16x128xf32>
    %cst_7 = arith.constant 2.000000e+00 : f32
    %8 = vector.broadcast %cst_7 : f32 to vector<16x128xf32>
    %9 = arith.mulf %8, %2 : vector<16x128xf32>
    %10 = arith.subf %7, %9 : vector<16x128xf32>
    %cst_8 = arith.constant 0.000000e+00 : f32
    %11 = vector.broadcast %cst_8 : f32 to vector<16x128xf32>
    %12 = arith.maximumf %10, %11 : vector<16x128xf32>
    %13 = math.sqrt %12 : vector<16x128xf32>
    %cst_9 = arith.constant 0.000000e+00 : f32
    %14 = vector.broadcast %cst_9 : f32 to vector<16x128xf32>
    %15 = arith.subf %14, %13 : vector<16x128xf32>
    %c0_10 = arith.constant 0 : index
    %c0_11 = arith.constant 0 : index
    %16 = vector.load %arg6[%c0_10, %c0_11] : memref<16x128xf32, #tpu.memory_space<vmem>>, vector<16x128xf32>
    tpu.vector_store %arg6[%c0_10, %c0_11], %15 {strides = array<i32>} : memref<16x128xf32, #tpu.memory_space<vmem>>, vector<16x128xf32>,
    return
  }
  func.func @transform_0(%arg0: i32, %arg1: i32) -> (i32, i32) {
    %c0_i32 = arith.constant 0 : i32
    %c0_i32_0 = arith.constant 0 : i32
    return %arg0, %c0_i32 : i32, i32
  }
  func.func @transform_1(%arg0: i32, %arg1: i32) -> (i32, i32) {
    %c0_i32 = arith.constant 0 : i32
    %c0_i32_0 = arith.constant 0 : i32
    return %c0_i32, %arg1 : i32, i32
  }
  func.func @transform_2(%arg0: i32, %arg1: i32) -> (i32, i32) {
    %c0_i32 = arith.constant 0 : i32
    %c0_i32_0 = arith.constant 0 : i32
    return %arg0, %c0_i32 : i32, i32
  }
  func.func @transform_3(%arg0: i32, %arg1: i32) -> (i32, i32) {
    %c0_i32 = arith.constant 0 : i32
    %c0_i32_0 = arith.constant 0 : i32
    return %arg1, %c0_i32 : i32, i32
  }
  func.func @transform_4(%arg0: i32, %arg1: i32) -> (i32, i32) {
    %c0_i32 = arith.constant 0 : i32
    return %arg0, %arg1 : i32, i32
  }
}

</mosaic_0001>

<llo_original>
// kernel: tpu_custom_call.1
$region0: #{tpu_custom_call.1}
  #allocation0 [shape = 'u32[]', space=smem, size = 0x4, offset = 0x4, fixed_abs, tag = 'smem constant byte address 0x4 - core index']
  #allocation1 [shape = 'u32[144,128]{1,0:T(1,128)}', space=vmem, size = 0x12000, scoped, tag = 'internal scratch']
  %s0 = inlined_call_operand.vmem [shape: f32[32,1], index: 0, kind: input, shape index: {}]
  %s1 = inlined_call_operand.vmem [shape: f32[1,128], index: 1, kind: input, shape index: {}]
  %s2 = inlined_call_operand.vmem [shape: f32[32,128], index: 2, kind: input, shape index: {}]
  %s3 = inlined_call_operand.hbm [shape: f32[128,128], index: 3, kind: input, shape index: {}]
  %s4 = inlined_call_operand.hbm [shape: f32[32,128], index: 4, kind: output, shape index: {}]
  %s5 = sld [smem:[#allocation0]]
  $region53: #{tpu_custom_call.1} parent=0
    _
  %s7 = ssub.s32 1, %s5
  %s8 = scalar_select 0, %s7, %s5
  $region1: #{tpu_custom_call.1} parent=0
    #allocation2 [shape = 'u8[65536]{0}', space=vmem, size = 0x10000, scoped, tag = 'input window, operand 3, single buffered']
    #allocation3 [shape = 's32[2]{0}', space=sflag, size = 0x8, scoped, tag = 'scoped memory for tpu_custom_call.1']
    #allocation4 [shape = 's32[2]{0}', space=sflag, size = 0x8, scoped, tag = 'scoped memory for tpu_custom_call.1']
    #allocation5 [shape = 'u8[16384]{0}', space=vmem, size = 0x4000, scoped, tag = 'output window, operand 0']
    %9 = vsyncpa [#allocation3], 0
    %10 = vsyncpa [#allocation4], 0
    %s11 = scalar_lea.sflag [#allocation4], 1
    %12 = vsyncpa %s11, 0
    loop: start=0, step=1, limit=4
    $region2: #{tpu_custom_call.1} parent=1 // loop_pre_header
      _
    $region3: #{tpu_custom_call.1} parent=1 // loop_header
      %s14 = sphi 0, %s18
      %p15 = scmp.ge.s32.totalorder %s14, 4
      %s21 = sphi 0, %s33
      %s22 = sphi 0, %s29
      %s23 = sphi 0, %s21
      %s24 = sphi 0, %s22
      %s25 = sphi 0, %s23
      %s26 = sphi 0, %s24
      %s36 = sphi 0, %s38
      %s39 = sphi 0, %s36
      %s40 = sphi 0, %s39
      %s56 = sphi 0, %s40
      %s62 = sphi 0, %s64
      %s65 = sphi 0, %s62
      %s66 = sphi 0, %s65
      %s82 = sphi 0, %s66
      %s88 = sphi 0, %s90
      %s91 = sphi 0, %s88
      %s92 = sphi 0, %s91
      %s108 = sphi 0, %s92
      %s114 = sphi 0, %s116
      %s117 = sphi 0, %s114
      %s118 = sphi 0, %s117
      %s134 = sphi 0, %s118
      %s142 = sphi 0, %s144
      %s145 = sphi 0, %s142
      %s146 = sphi 0, %s145
      %s162 = sphi 0, %s146
    $region4: #{tpu_custom_call.1} parent=1 // loop_header_branch
      %17 = sbr.rel (%p15) target = $region8
    $region5: #{tpu_custom_call.1} parent=1 // loop_body
      %s19 = ssub.s32 %s14, 1
      %s20 = ssub.s32 %s14, 2
      %s27 = sadd.s32 1, %s22
      %p28 = scmp.ge.s32.totalorder %s27, 1
      %s29 = scalar_select %p28, 0, %s27
      %s30 = sadd.s32 1, %s21
      %s31 = scalar_select %p28, %s30, %s21
      %p32 = scmp.ge.s32.totalorder %s31, 2
      %s33 = scalar_select %p32, 0, %s31
      %s34 = ssub.s32 %s21, %s33
      %p35 = scmp.eq.s32.totalorder %s34, 0
      %s37 = sadd.s32 %s36, 1
      %s38 = scalar_select %p35, %s36, %s37
      %p41 = pneg %p35
      %p42 = scmp.eq.s32.totalorder %s14, 1
      %p43 = por %p41, %p42
      %p44 = scmp.ne.s32.totalorder %s36, %s39
      %p45 = scmp.eq.s32.totalorder %s14, 0
      %p46 = por %p44, %p45
      %p47 = scmp.ne.s32.totalorder %s36, %s39
      %p48 = scmp.eq.s32.totalorder %s19, 1
      %p49 = por %p47, %p48
      %p50 = scmp.ne.s32.totalorder %s39, %s40
      %p51 = scmp.eq.s32.totalorder %s19, 0
      %p52 = por %p50, %p51
      %p53 = scmp.ne.s32.totalorder %s39, %s40
      %p54 = scmp.eq.s32.totalorder %s20, 1
      %p55 = por %p53, %p54
      %p57 = scmp.ne.s32.totalorder %s40, %s56
      %p58 = scmp.eq.s32.totalorder %s20, 0
      %p59 = por %p57, %p58
      %s60 = ssub.s32 %s22, %s29
      %p61 = scmp.eq.s32.totalorder %s60, 0
      %s63 = sadd.s32 %s62, 1
      %s64 = scalar_select %p61, %s62, %s63
      %p67 = pneg %p61
      %p68 = scmp.eq.s32.totalorder %s14, 1
      %p69 = por %p67, %p68
      %p70 = scmp.ne.s32.totalorder %s62, %s65
      %p71 = scmp.eq.s32.totalorder %s14, 0
      %p72 = por %p70, %p71
      %p73 = scmp.ne.s32.totalorder %s62, %s65
      %p74 = scmp.eq.s32.totalorder %s19, 1
      %p75 = por %p73, %p74
      %p76 = scmp.ne.s32.totalorder %s65, %s66
      %p77 = scmp.eq.s32.totalorder %s19, 0
      %p78 = por %p76, %p77
      %p79 = scmp.ne.s32.totalorder %s65, %s66
      %p80 = scmp.eq.s32.totalorder %s20, 1
      %p81 = por %p79, %p80
      %p83 = scmp.ne.s32.totalorder %s66, %s82
      %p84 = scmp.eq.s32.totalorder %s20, 0
      %p85 = por %p83, %p84
      %s86 = ssub.s32 %s21, %s33
      %p87 = scmp.eq.s32.totalorder %s86, 0
      %s89 = sadd.s32 %s88, 1
      %s90 = scalar_select %p87, %s88, %s89
      %p93 = pneg %p87
      %p94 = scmp.eq.s32.totalorder %s14, 1
      %p95 = por %p93, %p94
      %p96 = scmp.ne.s32.totalorder %s88, %s91
      %p97 = scmp.eq.s32.totalorder %s14, 0
      %p98 = por %p96, %p97
      %p99 = scmp.ne.s32.totalorder %s88, %s91
      %p100 = scmp.eq.s32.totalorder %s19, 1
      %p101 = por %p99, %p100
      %p102 = scmp.ne.s32.totalorder %s91, %s92
      %p103 = scmp.eq.s32.totalorder %s19, 0
      %p104 = por %p102, %p103
      %p105 = scmp.ne.s32.totalorder %s91, %s92
      %p106 = scmp.eq.s32.totalorder %s20, 1
      %p107 = por %p105, %p106
      %p109 = scmp.ne.s32.totalorder %s92, %s108
      %p110 = scmp.eq.s32.totalorder %s20, 0
      %p111 = por %p109, %p110
      %s112 = ssub.s32 %s22, %s29
      %p113 = scmp.eq.s32.totalorder %s112, 0
      %s115 = sadd.s32 %s114, 1
      %s116 = scalar_select %p113, %s114, %s115
      %p119 = pneg %p113
      %p120 = scmp.eq.s32.totalorder %s14, 1
      %p121 = por %p119, %p120
      %p122 = scmp.ne.s32.totalorder %s114, %s117
      %p123 = scmp.eq.s32.totalorder %s14, 0
      %p124 = por %p122, %p123
      %p125 = scmp.ne.s32.totalorder %s114, %s117
      %p126 = scmp.eq.s32.totalorder %s19, 1
      %p127 = por %p125, %p126
      %p128 = scmp.ne.s32.totalorder %s117, %s118
      %p129 = scmp.eq.s32.totalorder %s19, 0
      %p130 = por %p128, %p129
      %p131 = scmp.ne.s32.totalorder %s117, %s118
      %p132 = scmp.eq.s32.totalorder %s20, 1
      %p133 = por %p131, %p132
      %p135 = scmp.ne.s32.totalorder %s118, %s134
      %p136 = scmp.eq.s32.totalorder %s20, 0
      %p137 = por %p135, %p136
      %s138 = ssub.s32 %s21, %s33
      %s139 = ssub.s32 %s22, %s29
      %s140 = sor.u32 %s138, %s139
      %p141 = scmp.eq.s32.totalorder %s140, 0
      %s143 = sadd.s32 %s142, 1
      %s144 = scalar_select %p141, %s142, %s143
      %p147 = pneg %p141
      %p148 = scmp.eq.s32.totalorder %s14, 1
      %p149 = por %p147, %p148
      %p150 = scmp.ne.s32.totalorder %s142, %s145
      %p151 = scmp.eq.s32.totalorder %s14, 0
      %p152 = por %p150, %p151
      %p153 = scmp.ne.s32.totalorder %s142, %s145
      %p154 = scmp.eq.s32.totalorder %s19, 1
      %p155 = por %p153, %p154
      %p156 = scmp.ne.s32.totalorder %s145, %s146
      %p157 = scmp.eq.s32.totalorder %s19, 0
      %p158 = por %p156, %p157
      %p159 = scmp.ne.s32.totalorder %s145, %s146
      %p160 = scmp.eq.s32.totalorder %s20, 1
      %p161 = por %p159, %p160
      %p163 = scmp.ne.s32.totalorder %s146, %s162
      %p164 = scmp.eq.s32.totalorder %s20, 0
      %p165 = por %p163, %p164
      %p166 = scmp.le.s32.totalorder 1, %s14
      %p167 = scmp.lt.s32.totalorder %s14, 3
      %p168 = pnand %p166, %p167
      %p169 = pneg %p168
      // Predicated region
      $region9: #{tpu_custom_call.1} parent=5 // pred_check
        _
      $region10: #{tpu_custom_call.1} parent=5 // pred_check_branch
        %171 = sbr.rel (%p168) target = $region12
      $region11: #{tpu_custom_call.1} parent=5 // pred_region
        %s172 = ssub.s32 %s14, 1
        // Predicated region
        $region13: #{tpu_custom_call.1} parent=11 // pred_check
          %p173 = pneg %p78
        $region14: #{tpu_custom_call.1} parent=11 // pred_check_branch
          %175 = sbr.rel (%p173) target = $region16
        $region15: #{tpu_custom_call.1} parent=11 // pred_region
          %p176 = scmp.lt.s32.totalorder %s24, 0
          %s177 = scalar_select %p176, %s24, 0
          %s178 = scalar_lea.vmem %s1, %s177
        $region16: #{tpu_custom_call.1} parent=11 // pred_fallthru
          _
        // Predicated region
        $region17: #{tpu_custom_call.1} parent=11 // pred_check
          %p179 = pneg %p130
        $region18: #{tpu_custom_call.1} parent=11 // pred_check_branch
          %181 = sbr.rel (%p179) target = $region20
        $region19: #{tpu_custom_call.1} parent=11 // pred_region
          %s182 = smul.u32 16, %s24
          %s184 = ssub.s32 2048, 2048
          %185 = vsyncadd [#allocation3], %s184
          %s186 = smul.addr %s182, 128
          %s187 = scalar_lea.hbm %s3, %s186
          %s188 = sshll.u32 [#allocation2], 4
          %s189 = int_to_ptr.vmem [resolvable:$true] %s188
          %194 = dma.hbm_to_vmem [thread:$0]  %s187, 2048, %s189, [#allocation3], 128, 128, 8
        $region20: #{tpu_custom_call.1} parent=11 // pred_fallthru
          _
      $region12: #{tpu_custom_call.1} parent=5 // pred_fallthru
        _
      %p195 = scmp.lt.s32.totalorder %s14, 2
      // Predicated region
      $region21: #{tpu_custom_call.1} parent=5 // pred_check
        %p196 = pneg %p195
      $region22: #{tpu_custom_call.1} parent=5 // pred_check_branch
        %198 = sbr.rel (%p196) target = $region24
      $region23: #{tpu_custom_call.1} parent=5 // pred_region
        // Predicated region
        $region25: #{tpu_custom_call.1} parent=23 // pred_check
          %p199 = pneg %p46
        $region26: #{tpu_custom_call.1} parent=23 // pred_check_branch
          %201 = sbr.rel (%p199) target = $region28
        $region27: #{tpu_custom_call.1} parent=23 // pred_region
          %s202 = smul.u32 2, %s21
          %p203 = scmp.lt.s32.totalorder %s202, 3
          %s204 = scalar_select %p203, %s202, 3
          %s205 = smul.addr %s204, 8
          %s206 = scalar_lea.vmem %s0, %s205
          %s207 = smul.u32 2, %s21
        $region28: #{tpu_custom_call.1} parent=23 // pred_fallthru
          _
        // Predicated region
        $region29: #{tpu_custom_call.1} parent=23 // pred_check
          %p208 = pneg %p98
        $region30: #{tpu_custom_call.1} parent=23 // pred_check_branch
          %210 = sbr.rel (%p208) target = $region32
        $region31: #{tpu_custom_call.1} parent=23 // pred_region
          %s211 = smul.u32 2, %s21
          %p212 = scmp.lt.s32.totalorder %s211, 3
          %s213 = scalar_select %p212, %s211, 3
          %s214 = smul.addr %s213, 8
          %s215 = scalar_lea.vmem %s2, %s214
          %s216 = smul.u32 2, %s21
        $region32: #{tpu_custom_call.1} parent=23 // pred_fallthru
          _
      $region24: #{tpu_custom_call.1} parent=5 // pred_fallthru
        _
      %p217 = scmp.le.s32.totalorder 1, %s14
      %p218 = scmp.lt.s32.totalorder %s14, 3
      %p219 = pnand %p217, %p218
      %p220 = pneg %p219
      // Predicated region
      $region33: #{tpu_custom_call.1} parent=5 // pred_check
        _
      $region34: #{tpu_custom_call.1} parent=5 // pred_check_branch
        %222 = sbr.rel (%p219) target = $region36
      $region35: #{tpu_custom_call.1} parent=5 // pred_region
        %s223 = ssub.s32 %s14, 1
        // Predicated region
        $region37: #{tpu_custom_call.1} parent=35 // pred_check
          %p224 = pneg %p130
        $region38: #{tpu_custom_call.1} parent=35 // pred_check_branch
          %226 = sbr.rel (%p224) target = $region40
        $region39: #{tpu_custom_call.1} parent=35 // pred_region
          %227 = dma.done [#allocation3], 2048
        $region40: #{tpu_custom_call.1} parent=35 // pred_fallthru
          _
        %s228 = smul.u32 2, %s23
        %p229 = scmp.lt.s32.totalorder %s228, 3
        %s230 = scalar_select %p229, %s228, 3
        %s231 = smul.addr %s230, 8
        %s232 = scalar_lea.vmem %s0, %s231
        %p233 = pneg %p52
        %p234 = pneg %p49
        %p235 = scmp.lt.s32.totalorder %s24, 0
        %s236 = scalar_select %p235, %s24, 0
        %s237 = scalar_lea.vmem %s1, %s236
        %p238 = pneg %p78
        %p239 = pneg %p75
        %s240 = smul.u32 2, %s23
        %p241 = scmp.lt.s32.totalorder %s240, 3
        %s242 = scalar_select %p241, %s240, 3
        %s243 = smul.addr %s242, 8
        %s244 = scalar_lea.vmem %s2, %s243
        %p245 = pneg %p104
        %p246 = pneg %p101
        %p247 = pneg %p130
        %p248 = pneg %p127
        %p249 = pneg %p158
        %p250 = pneg %p155
        %s251 = sand.u32 %s145, 1
        %s252 = scalar_lea.sflag [#allocation4], %s251
        %s253 = sand.u32 %s145, 1
        %s254 = smul.addr %s253, 16
        %s255 = scalar_lea.vmem [#allocation5], %s254
        %s256 = smul.u32 2, %s23
        %p257 = scmp.lt.s32.totalorder %s256, 3
        %s258 = scalar_select %p257, %s256, 3
        %s259 = smul.addr %s258, 8
        %s260 = scalar_lea.vmem %s0, %s259
        %s261 = smul.u32 2, %s23
        %p262 = scmp.lt.s32.totalorder %s24, 0
        %s263 = scalar_select %p262, %s24, 0
        %s264 = scalar_lea.vmem %s1, %s263
        %s265 = smul.u32 2, %s23
        %p266 = scmp.lt.s32.totalorder %s265, 3
        %s267 = scalar_select %p266, %s265, 3
        %s268 = smul.addr %s267, 8
        %s269 = scalar_lea.vmem %s2, %s268
        %s270 = smul.u32 2, %s23
        %s271 = smul.u32 16, %s24
        %s272 = smul.u32 2, %s23
        %v273 = vld [vmem:[%s269] sm:$0xff]
        %v274 = vld [vmem:[%s269 + $0x8] sm:$0xff]
        %v275 = vld [vmem:[#allocation2] sm:$0xff]
        %v276 = vld [vmem:[#allocation2 + $0x8] sm:$0xff]
        %v277 = vld [vmem:[#allocation2 + $0x10] sm:$0xff]
        %v278 = vld [vmem:[#allocation2 + $0x18] sm:$0xff]
        %v279 = vld [vmem:[#allocation2 + $0x20] sm:$0xff]
        %v280 = vld [vmem:[#allocation2 + $0x28] sm:$0xff]
        %v281 = vld [vmem:[#allocation2 + $0x30] sm:$0xff]
        %v282 = vld [vmem:[#allocation2 + $0x38] sm:$0xff]
        %v283 = vld [vmem:[#allocation2 + $0x40] sm:$0xff]
        %v284 = vld [vmem:[#allocation2 + $0x48] sm:$0xff]
        %v285 = vld [vmem:[#allocation2 + $0x50] sm:$0xff]
        %v286 = vld [vmem:[#allocation2 + $0x58] sm:$0xff]
        %v287 = vld [vmem:[#allocation2 + $0x60] sm:$0xff]
        %v288 = vld [vmem:[#allocation2 + $0x68] sm:$0xff]
        %v289 = vld [vmem:[#allocation2 + $0x70] sm:$0xff]
        %v290 = vld [vmem:[#allocation2 + $0x78] sm:$0xff]
        %291 = vmatprep.subr.mxu0 0.0
        %292 = vmatpush1.xpose.msra.mxu0 %v290
        %293 = vmatprep.subr.mxu0 0.0
        %294 = vmatpush1.xpose.msra.mxu0 %v289
        %295 = vmatprep.subr.mxu0 0.0
        %296 = vmatpush1.xpose.msra.mxu0 %v288
        %297 = vmatprep.subr.mxu0 0.0
        %298 = vmatpush1.xpose.msra.mxu0 %v287
        %299 = vmatprep.subr.mxu0 0.0
        %300 = vmatpush1.xpose.msra.mxu0 %v286
        %301 = vmatprep.subr.mxu0 0.0
        %302 = vmatpush1.xpose.msra.mxu0 %v285
        %303 = vmatprep.subr.mxu0 0.0
        %304 = vmatpush1.xpose.msra.mxu0 %v284
        %305 = vmatprep.subr.mxu0 0.0
        %306 = vmatpush1.xpose.msra.mxu0 %v283
        %307 = vmatprep.subr.mxu0 0.0
        %308 = vmatpush1.xpose.msra.mxu0 %v282
        %309 = vmatprep.subr.mxu0 0.0
        %310 = vmatpush1.xpose.msra.mxu0 %v281
        %311 = vmatprep.subr.mxu0 0.0
        %312 = vmatpush1.xpose.msra.mxu0 %v280
        %313 = vmatprep.subr.mxu0 0.0
        %314 = vmatpush1.xpose.msra.mxu0 %v279
        %315 = vmatprep.subr.mxu0 0.0
        %316 = vmatpush1.xpose.msra.mxu0 %v278
        %317 = vmatprep.subr.mxu0 0.0
        %318 = vmatpush1.xpose.msra.mxu0 %v277
        %319 = vmatprep.subr.mxu0 0.0
        %320 = vmatpush1.xpose.msra.mxu0 %v276
        %321 = vmatprep.subr.mxu0 0.0
        %322 = vmatpush1.xpose.msra.mxu0 %v275
        %323 = vmatprep.subr.mxu0 0.0
        %324 = vmatpush2.xpose.msra.mxu0 0.0
        %325 = vmatprep.subr.mxu0 0.0
        %326 = vmatpush2.xpose.msra.mxu0 0.0
        %327 = vmatprep.subr.mxu0 0.0
        %328 = vmatpush2.xpose.msra.mxu0 0.0
        %329 = vmatprep.subr.mxu0 0.0
        %330 = vmatpush2.xpose.msra.mxu0 0.0
        %331 = vmatprep.subr.mxu0 0.0
        %332 = vmatpush2.xpose.msra.mxu0 0.0
        %333 = vmatprep.subr.mxu0 0.0
        %334 = vmatpush2.xpose.msra.mxu0 0.0
        %335 = vmatprep.subr.mxu0 0.0
        %336 = vmatpush2.xpose.msra.mxu0 0.0
        %337 = vmatprep.subr.mxu0 0.0
        %338 = vmatpush2.xpose.msra.mxu0 0.0
        %339 = vmatprep.subr.mxu0 0.0
        %340 = vmatpush2.xpose.msra.mxu0 0.0
        %341 = vmatprep.subr.mxu0 0.0
        %342 = vmatpush2.xpose.msra.mxu0 0.0
        %343 = vmatprep.subr.mxu0 0.0
        %344 = vmatpush2.xpose.msra.mxu0 0.0
        %345 = vmatprep.subr.mxu0 0.0
        %346 = vmatpush2.xpose.msra.mxu0 0.0
        %347 = vmatprep.subr.mxu0 0.0
        %348 = vmatpush2.xpose.msra.mxu0 0.0
        %349 = vmatprep.subr.mxu0 0.0
        %350 = vmatpush2.xpose.msra.mxu0 0.0
        %351 = vmatprep.subr.mxu0 0.0
        %352 = vmatpush2.xpose.msra.mxu0 0.0
        %353 = vmatprep.subr.mxu0 0.0
        %354 = vmatpush2.xpose.msra.mxu0 0.0
        %355 = vmatprep.mubr.f32.mxu0 0.0
        %356 = vmatmul.mubr.f32.gmra.mxu0 %v273
        %v357 = vpop.f32.mrf.mxu0
        %v358 = vadd.f32 0.0, %v357
        %v359 = vpop.f32.mrf.mxu0
        %360 = vmatprep.mubr.f32.mxu0 0.0
        %361 = vmatmul.mubr.f32.gmra.mxu0 %v274
        %v362 = vpop.f32.mrf.mxu0
        %v363 = vadd.f32 0.0, %v362
        %v364 = vpop.f32.mrf.mxu0
        %365 = vdwg.mxu0
        %v366 = vld [vmem:[%s260] sm:$0xff]
        %v367 = vld [vmem:[%s260 + $0x8] sm:$0xff]
        %v368 = vld [vmem:[%s264] sm:$0x1]
        %370 = vset.pattern.permute.xlu0 0
        %371 = vperm.xlu0 %370, %v366
        %v372 = vpop.permute.xlu0 %371
        %375 = vset.pattern.permute.xlu0 0
        %376 = vperm.xlu0 %375, %v367
        %v377 = vpop.permute.xlu0 %376
        %v380 = vlaneseq
        %v381 = vshrl.u32 %v380, 7
        %v382 = vsub.s32 0, %v381
        %v383 = vrot.slane %v368, %v382
        %v385 = vadd.f32 %v372, %v383
        %v386 = vadd.f32 %v377, %v383
        %v387 = vmul.f32 %v358, 2.0
        %v388 = vmul.f32 %v363, 2.0
        %v389 = vsub.f32 %v385, %v387
        %v390 = vsub.f32 %v386, %v388
        %v391 = vmax.f32 %v389, 0.0
        %v392 = vmax.f32 %v390, 0.0
        %v393 = vrsqrt.pop %v391
        %v394 = vmul.f32 %v391, %v393
        %vm395 = vcmp.eq.f32.partialorder %v391, inf
        %v396 = vsel %vm395, %v391, %v394
        %vm397 = vcmp.eq.f32.partialorder %v391, 0.0
        %v398 = vand.u32 %v391, 2147483648
        %v399 = vsel %vm397, %v398, %v396
        %v400 = vrsqrt.pop %v392
        %v401 = vmul.f32 %v392, %v400
        %vm402 = vcmp.eq.f32.partialorder %v392, inf
        %v403 = vsel %vm402, %v392, %v401
        %vm404 = vcmp.eq.f32.partialorder %v392, 0.0
        %v405 = vand.u32 %v392, 2147483648
        %v406 = vsel %vm404, %v405, %v403
        %v407 = vsub.f32 0.0, %v399
        %v408 = vsub.f32 0.0, %v406
        %409 = vst [vmem:[%s255] sm:$0xff] %v407
        %410 = vst [vmem:[%s255 + $0x8] sm:$0xff] %v408
        %s411 = sand.u32 %s145, 1
        %s412 = scalar_lea.sflag [#allocation4], %s411
        %s413 = sand.u32 %s145, 1
        %s414 = smul.addr %s413, 16
        %s415 = scalar_lea.vmem [#allocation5], %s414
        // Predicated region
        $region41: #{tpu_custom_call.1} parent=35 // pred_check
          %p416 = pneg %p155
        $region42: #{tpu_custom_call.1} parent=35 // pred_check_branch
          %418 = sbr.rel (%p416) target = $region44
        $region43: #{tpu_custom_call.1} parent=35 // pred_region
          %s419 = smul.u32 2, %s23
          %s421 = ssub.s32 256, 256
          %422 = vsyncadd %s412, %s421
          %s423 = sadd.s32 %s24, %s419
          %s424 = smul.addr %s423, 128
          %s425 = scalar_lea.hbm %s4, %s424
          %s426 = sshll.u32 %s415, 4
          %s427 = int_to_ptr.vmem [resolvable:$true] %s426
          %432 = dma.vmem_to_hbm [thread:$0]  %s427, 256, %s425, %s412, 128, 128, 8
        $region44: #{tpu_custom_call.1} parent=35 // pred_fallthru
          _
      $region36: #{tpu_custom_call.1} parent=5 // pred_fallthru
        _
      %p433 = scmp.le.s32.totalorder 2, %s14
      // Predicated region
      $region45: #{tpu_custom_call.1} parent=5 // pred_check
        %p434 = pneg %p433
      $region46: #{tpu_custom_call.1} parent=5 // pred_check_branch
        %436 = sbr.rel (%p434) target = $region48
      $region47: #{tpu_custom_call.1} parent=5 // pred_region
        %s437 = ssub.s32 %s14, 2
        // Predicated region
        $region49: #{tpu_custom_call.1} parent=47 // pred_check
          %p438 = pneg %p161
        $region50: #{tpu_custom_call.1} parent=47 // pred_check_branch
          %440 = sbr.rel (%p438) target = $region52
        $region51: #{tpu_custom_call.1} parent=47 // pred_region
          %s441 = sand.u32 %s146, 1
          %s442 = scalar_lea.sflag [#allocation4], %s441
          %s443 = sand.u32 %s146, 1
          %s444 = smul.addr %s443, 16
          %s445 = scalar_lea.vmem [#allocation5], %s444
          %446 = dma.done %s442, 256
        $region52: #{tpu_custom_call.1} parent=47 // pred_fallthru
          _
      $region48: #{tpu_custom_call.1} parent=5 // pred_fallthru
        _
    $region6: #{tpu_custom_call.1} parent=1 // loop_footer
      %s18 = sadd.s32 1, %s14
    $region7: #{tpu_custom_call.1} parent=1 // loop_footer_branch
      %13 = sbr.rel target = $region3
    $region8: #{tpu_custom_call.1} parent=1 // loop_exit
      _
    %447 = vsyncpa [#allocation3], 1
    %s448 = scalar_lea.sflag [#allocation3], 1
    %449 = vsyncpa %s448, 1
    %450 = vsyncpa [#allocation4], 1
    %s451 = scalar_lea.sflag [#allocation4], 1
    %452 = vsyncpa %s451, 1

</llo_original>
